<compile_context>
chip_gen: v7x
topology: tpu7x:2x2x1
jax: 0.10.0
libtpu: 0.0.40
codegen_flags: <defaults>
</compile_context>

<pallas_src>
import functools

import jax
import jax.numpy as jnp
from jax.experimental import pallas as pl
from jax.experimental.pallas import tpu as pltpu

_LANE = 128


def _round_up(x, m):
    return ((x + m - 1) // m) * m


_VMEM_CAP = [None]


def _vmem_capacity_bytes():
    """Per-core VMEM capacity (v5e/v6e: 128 MiB, v7x: 64 MiB); safe fallback."""
    if _VMEM_CAP[0] is None:
        try:
            _VMEM_CAP[0] = int(pltpu.get_tpu_info().vmem_capacity_bytes)
        except Exception:
            _VMEM_CAP[0] = 64 * 1024 * 1024   # conservative (v7x-sized)
    return _VMEM_CAP[0]


def _choose_h_tile(hidden_pad, k_dim):
    """Largest hidden tile Ht (multiple of 128 dividing hidden_pad) whose
    double-buffered weight chunk fits the per-generation VMEM budget.

    Uses worst-case 4-byte weights so the choice (and hence the baked
    chunk-major column layout) is independent of the weight dtype — a bf16 /
    int8 cast of the same stack keeps the same layout.
    """
    budget = max(8 << 20, int(_vmem_capacity_bytes() * 0.35))
    for nt in range(1, hidden_pad // _LANE + 1):
        if hidden_pad % nt:
            continue
        ht = hidden_pad // nt
        if ht % _LANE:
            continue
        if 2 * k_dim * 4 * ht * 4 <= budget:
            return ht
    return _LANE


def _to_chunk_major(arr, hidden_pad, h_tile):
    """(..., 4, Hp) gate-major [i,f,o,g] -> (..., 4*Hp) chunk-major columns:
    [chunk0: i f o g | chunk1: i f o g | ...], each gate slice h_tile wide."""
    nt = hidden_pad // h_tile
    lead = arr.shape[:-2]
    a = arr.reshape(lead + (4, nt, h_tile))
    a = jnp.moveaxis(a, -2, -3)                 # (..., nt, 4, h_tile)
    return a.reshape(lead + (4 * hidden_pad,))


def _stacked_lstm_kernel(gx0_ref, h0_ref, c0_ref, w_ref, b_ref,
                         h1_ref, c1_ref, xh_ref, xnext_ref, *,
                         hidden_pad, h_tile):
    """Grid point (l, t) = hidden chunk t of LSTM layer l.

    gx0_ref   : (B, 4*Hp)      layer-0 input projection (resident, f32)
    h0_ref    : (B, Hp)        h_0[l]
    c0_ref    : (B, Ht)        c_0[l], chunk t
    w_ref     : (2*Hp, 4*Ht)   fused [w_ih_t ; w_hh_t], gates [i,f,o,g] of chunk t
    b_ref     : (1, 4*Ht)      fused bias (f32), chunk t
    h1_ref    : (B, Ht)        h_1[l] chunk t output slab
    c1_ref    : (B, Ht)        c_1[l] chunk t output slab
    xh_ref    : (B, 2*Hp)      persistent fused [x_l ; h_0[l]] MXU operand
    xnext_ref : (B, Hp)        persistent carry of h_1[l] -> x_{l+1}
    """
    l = pl.program_id(0)
    t = pl.program_id(1)
    num_layers = pl.num_programs(0)
    Hp = hidden_pad
    Ht = h_tile
    dt = xh_ref.dtype

    # Start of a new layer: refresh the fused [x_l ; h_0[l]] operand in place
    # (no lane-axis concatenate / fresh VMEM copy per layer).
    @pl.when(t == 0)
    def _():
        xh_ref[:, pl.ds(Hp, Hp)] = h0_ref[...].astype(dt)

    @pl.when((t == 0) & (l == 0))
    def _():
        # Layer 0's input projection arrives via gx0 (its ih weight rows are
        # exactly zero); zero the x lanes so stale VMEM can't produce NaN * 0.
        xh_ref[:, pl.ds(0, Hp)] = jnp.zeros(h0_ref.shape, dt)

    @pl.when((t == 0) & (l > 0))
    def _():
        xh_ref[:, pl.ds(0, Hp)] = xnext_ref[...]

    # One MXU push over the fused K = 2*Hp contraction, f32 accumulation.
    gates = jnp.dot(xh_ref[...], w_ref[...],
                    preferred_element_type=jnp.float32)
    gates = gates + b_ref[...]

    # Layer 0 adds the precomputed input projection for this hidden chunk.
    off = pl.multiple_of(t * 4 * Ht, _LANE)
    gx = gx0_ref[:, pl.ds(off, 4 * Ht)]
    gates = gates + jnp.where(l == 0, gx, 0.0)

    # Chunk-local gate order [i, f, o, g]: one sigmoid over 3*Ht lanes and one
    # tanh over Ht lanes (instead of full-slab sigmoid AND tanh).
    sfo = jax.nn.sigmoid(gates[:, :3 * Ht])
    g_g = jnp.tanh(gates[:, 3 * Ht:])
    i_g = sfo[:, :Ht]
    f_g = sfo[:, Ht:2 * Ht]
    o_g = sfo[:, 2 * Ht:]

    c1 = f_g * c0_ref[...].astype(jnp.float32) + i_g * g_g
    h1 = o_g * jnp.tanh(c1)

    h1_ref[...] = h1.astype(h1_ref.dtype)
    c1_ref[...] = c1.astype(c1_ref.dtype)

    # Carry this chunk of h_1 forward as layer l+1's input (skip on the last
    # layer). Written to a separate carry so later chunks of THIS layer still
    # see the unmodified x_l in xh_ref.
    @pl.when(l + 1 < num_layers)
    def _():
        xnext_ref[:, pl.ds(pl.multiple_of(t * Ht, _LANE), Ht)] = h1.astype(dt)


def stacked_lstm_pallas(gx0, h0p, c0p, w_stack, b_stack):
    """Fused forward over all layers.

    gx0     : (B, 4*Hp)       layer-0 input projection, f32, chunk-major cols
    h0p,c0p : (L, B, Hp)      initial states, hidden dim padded to Hp (128*k)
    w_stack : (L, 2*Hp, 4*Hp) fused, pre-transposed, chunk-major weights
    b_stack : (L, 1, 4*Hp)    fused biases (f32), chunk-major
    returns : h_1, c_1 each (L, B, Hp), f32
    """
    L, B, Hp = h0p.shape
    K = w_stack.shape[1]          # 2*Hp
    G = w_stack.shape[2]          # 4*Hp
    Ht = _choose_h_tile(Hp, K)
    NT = Hp // Ht
    compute_dtype = w_stack.dtype
    w_item = jnp.dtype(compute_dtype).itemsize

    # Advisory cost estimate so XLA schedules surrounding ops around the call.
    flops = 2 * B * K * G * L
    transcendentals = 5 * B * Hp * L            # sigmoid(3Hp)+tanh(Hp)+tanh(c1)
    bytes_accessed = (L * K * G * w_item + L * G * 4 + B * G * 4
                      + 4 * L * B * Hp * 4)

    # Double-buffered block bytes + persistent scratch + headroom, clamped
    # against the queried per-generation VMEM capacity.
    w_block = K * 4 * Ht * w_item
    need = (2 * (w_block                    # weights
                 + B * G * 4                # gx0 (resident, counted x2 anyway)
                 + B * Hp * 4               # h0
                 + B * Ht * 4               # c0
                 + 4 * Ht * 4               # bias
                 + 2 * B * Ht * 4)          # h1 + c1
            + B * K * w_item + B * Hp * w_item   # persistent scratches
            + (4 << 20))                         # gate-slab / spill headroom
    vmem_limit = int(max(min(need, int(_vmem_capacity_bytes() * 0.9)),
                         16 * 1024 * 1024))

    kernel = functools.partial(_stacked_lstm_kernel,
                               hidden_pad=Hp, h_tile=Ht)

    h1p, c1p = pl.pallas_call(
        kernel,
        out_shape=(jax.ShapeDtypeStruct((L, B, Hp), jnp.float32),
                   jax.ShapeDtypeStruct((L, B, Hp), jnp.float32)),
        grid_spec=pltpu.PrefetchScalarGridSpec(
            num_scalar_prefetch=0,
            grid=(L, NT),
            in_specs=[
                pl.BlockSpec((B, G), lambda l, t: (0, 0)),                # gx0
                pl.BlockSpec((None, B, Hp), lambda l, t: (l, 0, 0)),      # h0[l]
                pl.BlockSpec((None, B, Ht), lambda l, t: (l, 0, t)),      # c0 chunk
                pl.BlockSpec((None, K, 4 * Ht), lambda l, t: (l, 0, t)),  # W chunk
                pl.BlockSpec((None, 1, 4 * Ht), lambda l, t: (l, 0, t)),  # b chunk
            ],
            out_specs=(
                pl.BlockSpec((None, B, Ht), lambda l, t: (l, 0, t)),      # h1 chunk
                pl.BlockSpec((None, B, Ht), lambda l, t: (l, 0, t)),      # c1 chunk
            ),
            scratch_shapes=[
                pltpu.VMEM((B, K), compute_dtype),    # fused [x ; h0] operand
                pltpu.VMEM((B, Hp), compute_dtype),   # h1 -> next-layer-x carry
            ],
        ),
        compiler_params=pltpu.CompilerParams(
            dimension_semantics=("arbitrary", "arbitrary"),  # sequential carry
            vmem_limit_bytes=vmem_limit,
        ),
        cost_estimate=pl.CostEstimate(flops=flops,
                                      transcendentals=transcendentals,
                                      bytes_accessed=bytes_accessed),
    )(gx0, h0p, c0p, w_stack, b_stack)
    return h1p, c1p


def init_stacked_lstm_params(key, num_layers, input_size, rnn_size,
                             weight_dtype=jnp.float32):
    """PyTorch-LSTMCell-shaped init, then fuse / pad / permute:

    per layer: weight_ih (4H, D_in), weight_hh (4H, H), b_ih/b_hh (4H,)
      -> fused (2*Hp, 4*Hp) weight with chunk-major gate columns [i,f,o,g],
         Hp = H rounded up to 128; layer 0's ih rows are zero (its input
         projection is handled by the separate (input_size, 4*Hp) w_in).
    Returns (w_stack, b_stack, w_in, raw) where raw holds the PyTorch-layout
    parameters for the pure-JAX reference.
    """
    H = rnn_size
    Hp = _round_up(H, _LANE)
    K = 2 * Hp
    Ht = _choose_h_tile(Hp, K)
    bound = 1.0 / float(H) ** 0.5
    perm = (0, 1, 3, 2)   # ours [i,f,o,g] <- PyTorch [i,f,g,o]

    raw = []
    w_layers, b_layers = [], []
    w_in = None
    d_in = input_size
    for layer in range(num_layers):
        key, k1, k2, k3, k4 = jax.random.split(key, 5)
        w_ih = jax.random.uniform(k1, (4 * H, d_in), jnp.float32, -bound, bound)
        w_hh = jax.random.uniform(k2, (4 * H, H), jnp.float32, -bound, bound)
        b_ih = jax.random.uniform(k3, (4 * H,), jnp.float32, -bound, bound)
        b_hh = jax.random.uniform(k4, (4 * H,), jnp.float32, -bound, bound)
        raw.append((w_ih, w_hh, b_ih, b_hh))

        def gate_blocks(w):
            return [w[g * H:(g + 1) * H, :].T for g in perm]   # each (cols, H)

        hh = jnp.zeros((Hp, 4, Hp), jnp.float32)
        for gi, blk in enumerate(gate_blocks(w_hh)):
            hh = hh.at[:H, gi, :H].set(blk)

        ih = jnp.zeros((Hp, 4, Hp), jnp.float32)
        if layer > 0:
            for gi, blk in enumerate(gate_blocks(w_ih)):       # d_in == H here
                ih = ih.at[:H, gi, :H].set(blk)
        else:
            w_in = jnp.zeros((input_size, 4, Hp), jnp.float32)
            for gi, blk in enumerate(gate_blocks(w_ih)):       # (input_size, H)
                w_in = w_in.at[:, gi, :H].set(blk)

        w_fused = jnp.concatenate([ih, hh], axis=0)            # (K, 4, Hp)
        w_layers.append(_to_chunk_major(w_fused, Hp, Ht))       # (K, 4*Hp)

        b = jnp.zeros((4, Hp), jnp.float32)
        bsum = b_ih + b_hh
        for gi, g in enumerate(perm):
            b = b.at[gi, :H].set(bsum[g * H:(g + 1) * H])
        b_layers.append(_to_chunk_major(b, Hp, Ht).reshape(1, 4 * Hp))

        d_in = H

    w_stack = jnp.stack(w_layers).astype(weight_dtype)   # (L, 2*Hp, 4*Hp)
    b_stack = jnp.stack(b_layers)                        # (L, 1, 4*Hp), f32
    w_in = _to_chunk_major(w_in, Hp, Ht)                 # (input_size, 4*Hp), f32
    return w_stack, b_stack, w_in, raw


def stacked_rnn_forward(inputs, hidden, w_stack, b_stack, w_in):
    """StackedRNN.forward for rnn='lstm'.

    inputs : (B, input_size)
    hidden : (h_0, c_0), each (num_layers, B, rnn_size)
    returns: (inputs_out, (h_1, c_1)) matching the PyTorch module's layout.
    Note: with bf16 w_stack the carried activation is also bf16 (weights +
    activations in bf16), not weights-only.
    """
    h_0, c_0 = hidden
    _, _, H = h_0.shape
    Hp = w_stack.shape[1] // 2
    if Hp != H:
        pad = ((0, 0), (0, 0), (0, Hp - H))
        h0p = jnp.pad(h_0, pad)
        c0p = jnp.pad(c_0, pad)
    else:
        h0p, c0p = h_0, c_0
    # Layer-0 input projection: tiny XLA matmul, keeps every kernel layer's
    # fused weight at a uniform (2*Hp, 4*Hp) with no zero-padded input rows.
    gx0 = jnp.dot(inputs.astype(jnp.float32), w_in)      # (B, 4*Hp)
    h1p, c1p = stacked_lstm_pallas(gx0, h0p, c0p, w_stack, b_stack)
    h_1 = h1p[..., :H]
    c_1 = c1p[..., :H]
    # Output activation == last layer's h; inter-layer dropout is identity in
    # eval mode.
    return h_1[-1], (h_1, c_1)


def _reference_forward(x, h_0, c_0, raw):
    """Pure-JAX f32 reference using the raw PyTorch-layout parameters."""
    L, B, H = h_0.shape
    xi = x
    hs, cs = [], []
    for l, (w_ih, w_hh, b_ih, b_hh) in enumerate(raw):
        gates = xi @ w_ih.T + b_ih + h_0[l] @ w_hh.T + b_hh
        i_g = jax.nn.sigmoid(gates[:, :H])
        f_g = jax.nn.sigmoid(gates[:, H:2 * H])
        g_g = jnp.tanh(gates[:, 2 * H:3 * H])
        o_g = jax.nn.sigmoid(gates[:, 3 * H:])
        c1 = f_g * c_0[l] + i_g * g_g
        h1 = o_g * jnp.tanh(c1)
        xi = h1
        hs.append(h1)
        cs.append(c1)
    return xi, (jnp.stack(hs), jnp.stack(cs))


if __name__ == "__main__":
    num_layers = 3
    input_size = 48    # != rnn_size to exercise the hoisted input projection
    rnn_size = 32
    batch = 8

    key = jax.random.PRNGKey(0)
    k_params, k_x, k_h, k_c = jax.random.split(key, 4)

    w_stack, b_stack, w_in, raw = init_stacked_lstm_params(
        k_params, num_layers, input_size, rnn_size)
    x = jax.random.normal(k_x, (batch, input_size), jnp.float32)
    h_0 = jax.random.normal(k_h, (num_layers, batch, rnn_size), jnp.float32)
    c_0 = jax.random.normal(k_c, (num_layers, batch, rnn_size), jnp.float32)

    fwd = jax.jit(stacked_rnn_forward)
    out, (h_1, c_1) = fwd(x, (h_0, c_0), w_stack, b_stack, w_in)
    jax.block_until_ready((out, h_1, c_1))

    ref_out, (ref_h, ref_c) = _reference_forward(x, h_0, c_0, raw)
    assert jnp.allclose(out, ref_out, atol=1e-4, rtol=1e-4)
    assert jnp.allclose(h_1, ref_h, atol=1e-4, rtol=1e-4)
    assert jnp.allclose(c_1, ref_c, atol=1e-4, rtol=1e-4)

    # bf16 weight (+ carried-activation) path: halves the weight DMA, which is
    # the roofline of this kernel; loose tolerance vs the f32 reference.
    w_bf16 = w_stack.astype(jnp.bfloat16)
    out_b, (h_b, c_b) = fwd(x, (h_0, c_0), w_bf16, b_stack, w_in)
    jax.block_until_ready((out_b, h_b, c_b))
    assert jnp.allclose(h_b, ref_h, atol=1e-1, rtol=1e-1)
    assert jnp.allclose(c_b, ref_c, atol=1e-1, rtol=1e-1)

    print("KERNEL_OK")
</pallas_src>

<mosaic_0001>
module attributes {stable_mosaic.version = 11 : i64} {
  func.func @_stacked_lstm_kernel(%arg0: i32, %arg1: i32, %arg2: memref<8x512xf32, #tpu.memory_space<vmem>>, %arg3: memref<1x8x128xf32, #tpu.memory_space<vmem>>, %arg4: memref<1x8x128xf32, #tpu.memory_space<vmem>>, %arg5: memref<1x256x512xf32, #tpu.memory_space<vmem>>, %arg6: memref<1x1x512xf32, #tpu.memory_space<vmem>>, %arg7: memref<1x8x128xf32, #tpu.memory_space<vmem>>, %arg8: memref<1x8x128xf32, #tpu.memory_space<vmem>>, %arg9: memref<8x256xf32, #tpu.memory_space<vmem>>, %arg10: memref<8x128xf32, #tpu.memory_space<vmem>>) attributes {dimension_semantics = [#tpu.dimension_semantics<arbitrary>, #tpu.dimension_semantics<arbitrary>], iteration_bounds = array<i64: 3, 1>, scalar_prefetch = 0 : i64, scratch_operands = 2 : i64, tpu.core_type = #tpu.core_type<tc>, window_params = [{pipeline_mode = #tpu.pipeline_mode<synchronous>, transform_indices = @transform_0, window_bounds = array<i64: 8, 512>}, {transform_indices = @transform_1, window_bounds = array<i64: 1, 8, 128>}, {transform_indices = @transform_2, window_bounds = array<i64: 1, 8, 128>}, {transform_indices = @transform_3, window_bounds = array<i64: 1, 256, 512>}, {transform_indices = @transform_4, window_bounds = array<i64: 1, 1, 512>}, {transform_indices = @transform_5, window_bounds = array<i64: 1, 8, 128>}, {transform_indices = @transform_6, window_bounds = array<i64: 1, 8, 128>}]} {
    %c0_i32 = arith.constant 0 : i32
    %0 = arith.cmpi eq, %arg1, %c0_i32 : i32
    %1 = arith.extui %0 : i1 to i32
    %c0_i32_0 = arith.constant 0 : i32
    %2 = arith.cmpi ne, %1, %c0_i32_0 : i32
    scf.if %2 {
      %c0_28 = arith.constant 0 : index
      %c0_29 = arith.constant 0 : index
      %c0_30 = arith.constant 0 : index
      %58 = vector.load %arg3[%c0_28, %c0_29, %c0_30] : memref<1x8x128xf32, #tpu.memory_space<vmem>>, vector<1x8x128xf32>
      %59 = vector.shape_cast %58 : vector<1x8x128xf32> to vector<8x128xf32>
      %c0_31 = arith.constant 0 : index
      %c128 = arith.constant 128 : index
      %60 = vector.load %arg9[%c0_31, %c128] : memref<8x256xf32, #tpu.memory_space<vmem>>, vector<8x128xf32>
      tpu.vector_store %arg9[%c0_31, %c128], %59 {strides = array<i32>} : memref<8x256xf32, #tpu.memory_space<vmem>>, vector<8x128xf32>,
    } else {
    }
    %c0_i32_1 = arith.constant 0 : i32
    %3 = arith.cmpi eq, %arg1, %c0_i32_1 : i32
    %c0_i32_2 = arith.constant 0 : i32
    %4 = arith.cmpi eq, %arg0, %c0_i32_2 : i32
    %5 = arith.andi %3, %4 : i1
    %6 = arith.extui %5 : i1 to i32
    %c0_i32_3 = arith.constant 0 : i32
    %7 = arith.cmpi ne, %6, %c0_i32_3 : i32
    scf.if %7 {
      %cst_28 = arith.constant 0.000000e+00 : f32
      %58 = vector.broadcast %cst_28 : f32 to vector<8x128xf32>
      %c0_29 = arith.constant 0 : index
      %c0_30 = arith.constant 0 : index
      %59 = vector.load %arg9[%c0_29, %c0_30] : memref<8x256xf32, #tpu.memory_space<vmem>>, vector<8x128xf32>
      tpu.vector_store %arg9[%c0_29, %c0_30], %58 {strides = array<i32>} : memref<8x256xf32, #tpu.memory_space<vmem>>, vector<8x128xf32>,
    } else {
    }
    %c0_i32_4 = arith.constant 0 : i32
    %8 = arith.cmpi eq, %arg1, %c0_i32_4 : i32
    %c0_i32_5 = arith.constant 0 : i32
    %9 = arith.cmpi sgt, %arg0, %c0_i32_5 : i32
    %10 = arith.andi %8, %9 : i1
    %11 = arith.extui %10 : i1 to i32
    %c0_i32_6 = arith.constant 0 : i32
    %12 = arith.cmpi ne, %11, %c0_i32_6 : i32
    scf.if %12 {
      %c0_28 = arith.constant 0 : index
      %c0_29 = arith.constant 0 : index
      %58 = vector.load %arg10[%c0_28, %c0_29] : memref<8x128xf32, #tpu.memory_space<vmem>>, vector<8x128xf32>
      %c0_30 = arith.constant 0 : index
      %c0_31 = arith.constant 0 : index
      %59 = vector.load %arg9[%c0_30, %c0_31] : memref<8x256xf32, #tpu.memory_space<vmem>>, vector<8x128xf32>
      tpu.vector_store %arg9[%c0_30, %c0_31], %58 {strides = array<i32>} : memref<8x256xf32, #tpu.memory_space<vmem>>, vector<8x128xf32>,
    } else {
    }
    %c0 = arith.constant 0 : index
    %c0_7 = arith.constant 0 : index
    %13 = vector.load %arg9[%c0, %c0_7] : memref<8x256xf32, #tpu.memory_space<vmem>>, vector<8x256xf32>
    %c0_8 = arith.constant 0 : index
    %c0_9 = arith.constant 0 : index
    %c0_10 = arith.constant 0 : index
    %14 = vector.load %arg5[%c0_8, %c0_9, %c0_10] : memref<1x256x512xf32, #tpu.memory_space<vmem>>, vector<1x256x512xf32>
    %15 = vector.shape_cast %14 : vector<1x256x512xf32> to vector<256x512xf32>
    %cst = arith.constant dense<0.000000e+00> : vector<8x512xf32>
    %16 = tpu.matmul %13, %15, %cst {dimension_numbers = #tpu.dot_dimension_numbers<[1], [0], [0], [1], [0, 0, 1, 1], [], []>} : vector<8x256xf32>, vector<256x512xf32>, vector<8x512xf32> -> vector<8x512xf32>
    %c0_11 = arith.constant 0 : index
    %c0_12 = arith.constant 0 : index
    %c0_13 = arith.constant 0 : index
    %17 = vector.load %arg6[%c0_11, %c0_12, %c0_13] : memref<1x1x512xf32, #tpu.memory_space<vmem>>, vector<1x1x512xf32>
    %18 = vector.shape_cast %17 : vector<1x1x512xf32> to vector<1x512xf32>
    %19 = vector.broadcast %18 : vector<1x512xf32> to vector<8x512xf32>
    %20 = arith.addf %16, %19 : vector<8x512xf32>
    %c4_i32 = arith.constant 4 : i32
    %21 = arith.muli %arg1, %c4_i32 : i32
    %c128_i32 = arith.constant 128 : i32
    %22 = arith.muli %21, %c128_i32 : i32
    %23 = tpu.assume_multiple %22, 128 : i32
    %c0_14 = arith.constant 0 : index
    %24 = arith.index_cast %23 : i32 to index
    %25 = vector.load %arg2[%c0_14, %24] : memref<8x512xf32, #tpu.memory_space<vmem>>, vector<8x512xf32>
    %c0_i32_15 = arith.constant 0 : i32
    %26 = arith.cmpi eq, %arg0, %c0_i32_15 : i32
    %cst_16 = arith.constant 0.000000e+00 : f32
    %27 = vector.broadcast %cst_16 : f32 to vector<8x512xf32>
    %28 = arith.select %26, %25, %27 : vector<8x512xf32>
    %29 = arith.addf %20, %28 : vector<8x512xf32>
    %30 = vector.extract_strided_slice %29 {offsets = [0, 0], sizes = [8, 384], strides = [1, 1]} : vector<8x512xf32> to vector<8x384xf32>
    %31 = arith.negf %30 : vector<8x384xf32>
    %32 = math.exp %31 : vector<8x384xf32>
    %cst_17 = arith.constant 1.000000e+00 : f32
    %33 = vector.broadcast %cst_17 : f32 to vector<8x384xf32>
    %34 = arith.addf %33, %32 : vector<8x384xf32>
    %35 = arith.divf %33, %34 : vector<8x384xf32>
    %36 = vector.extract_strided_slice %29 {offsets = [0, 384], sizes = [8, 128], strides = [1, 1]} : vector<8x512xf32> to vector<8x128xf32>
    %37 = math.tanh %36 : vector<8x128xf32>
    %38 = vector.extract_strided_slice %35 {offsets = [0, 0], sizes = [8, 128], strides = [1, 1]} : vector<8x384xf32> to vector<8x128xf32>
    %39 = vector.extract_strided_slice %35 {offsets = [0, 128], sizes = [8, 128], strides = [1, 1]} : vector<8x384xf32> to vector<8x128xf32>
    %40 = vector.extract_strided_slice %35 {offsets = [0, 256], sizes = [8, 128], strides = [1, 1]} : vector<8x384xf32> to vector<8x128xf32>
    %c0_18 = arith.constant 0 : index
    %c0_19 = arith.constant 0 : index
    %c0_20 = arith.constant 0 : index
    %41 = vector.load %arg4[%c0_18, %c0_19, %c0_20] : memref<1x8x128xf32, #tpu.memory_space<vmem>>, vector<1x8x128xf32>
    %42 = vector.shape_cast %41 : vector<1x8x128xf32> to vector<8x128xf32>
    %43 = arith.mulf %39, %42 : vector<8x128xf32>
    %44 = arith.mulf %38, %37 : vector<8x128xf32>
    %45 = arith.addf %43, %44 : vector<8x128xf32>
    %46 = math.tanh %45 : vector<8x128xf32>
    %47 = arith.mulf %40, %46 : vector<8x128xf32>
    %c0_21 = arith.constant 0 : index
    %c0_22 = arith.constant 0 : index
    %c0_23 = arith.constant 0 : index
    %48 = vector.load %arg7[%c0_21, %c0_22, %c0_23] : memref<1x8x128xf32, #tpu.memory_space<vmem>>, vector<1x8x128xf32>
    %49 = vector.shape_cast %48 : vector<1x8x128xf32> to vector<8x128xf32>
    %50 = vector.shape_cast %47 : vector<8x128xf32> to vector<1x8x128xf32>
    tpu.vector_store %arg7[%c0_21, %c0_22, %c0_23], %50 {strides = array<i32>} : memref<1x8x128xf32, #tpu.memory_space<vmem>>, vector<1x8x128xf32>,
    %c0_24 = arith.constant 0 : index
    %c0_25 = arith.constant 0 : index
    %c0_26 = arith.constant 0 : index
    %51 = vector.load %arg8[%c0_24, %c0_25, %c0_26] : memref<1x8x128xf32, #tpu.memory_space<vmem>>, vector<1x8x128xf32>
    %52 = vector.shape_cast %51 : vector<1x8x128xf32> to vector<8x128xf32>
    %53 = vector.shape_cast %45 : vector<8x128xf32> to vector<1x8x128xf32>
    tpu.vector_store %arg8[%c0_24, %c0_25, %c0_26], %53 {strides = array<i32>} : memref<1x8x128xf32, #tpu.memory_space<vmem>>, vector<1x8x128xf32>,
    %c1_i32 = arith.constant 1 : i32
    %54 = arith.addi %arg0, %c1_i32 : i32
    %c3_i32 = arith.constant 3 : i32
    %55 = arith.cmpi slt, %54, %c3_i32 : i32
    %56 = arith.extui %55 : i1 to i32
    %c0_i32_27 = arith.constant 0 : i32
    %57 = arith.cmpi ne, %56, %c0_i32_27 : i32
    scf.if %57 {
      %c128_i32_28 = arith.constant 128 : i32
      %58 = arith.muli %arg1, %c128_i32_28 : i32
      %59 = tpu.assume_multiple %58, 128 : i32
      %c0_29 = arith.constant 0 : index
      %60 = arith.index_cast %59 : i32 to index
      %61 = vector.load %arg10[%c0_29, %60] : memref<8x128xf32, #tpu.memory_space<vmem>>, vector<8x128xf32>
      tpu.vector_store %arg10[%c0_29, %60], %47 {strides = array<i32>} : memref<8x128xf32, #tpu.memory_space<vmem>>, vector<8x128xf32>,
    } else {
    }
    return
  }
  func.func @transform_0(%arg0: i32, %arg1: i32) -> (i32, i32) {
    %c0_i32 = arith.constant 0 : i32
    %c0_i32_0 = arith.constant 0 : i32
    %c0_i32_1 = arith.constant 0 : i32
    return %c0_i32, %c0_i32_0 : i32, i32
  }
  func.func @transform_1(%arg0: i32, %arg1: i32) -> (i32, i32, i32) {
    %c0_i32 = arith.constant 0 : i32
    %c0_i32_0 = arith.constant 0 : i32
    %c0_i32_1 = arith.constant 0 : i32
    return %arg0, %c0_i32, %c0_i32_0 : i32, i32, i32
  }
  func.func @transform_2(%arg0: i32, %arg1: i32) -> (i32, i32, i32) {
    %c0_i32 = arith.constant 0 : i32
    %c0_i32_0 = arith.constant 0 : i32
    return %arg0, %c0_i32, %arg1 : i32, i32, i32
  }
  func.func @transform_3(%arg0: i32, %arg1: i32) -> (i32, i32, i32) {
    %c0_i32 = arith.constant 0 : i32
    %c0_i32_0 = arith.constant 0 : i32
    return %arg0, %c0_i32, %arg1 : i32, i32, i32
  }
  func.func @transform_4(%arg0: i32, %arg1: i32) -> (i32, i32, i32) {
    %c0_i32 = arith.constant 0 : i32
    %c0_i32_0 = arith.constant 0 : i32
    return %arg0, %c0_i32, %arg1 : i32, i32, i32
  }
  func.func @transform_5(%arg0: i32, %arg1: i32) -> (i32, i32, i32) {
    %c0_i32 = arith.constant 0 : i32
    %c0_i32_0 = arith.constant 0 : i32
    return %arg0, %c0_i32, %arg1 : i32, i32, i32
  }
  func.func @transform_6(%arg0: i32, %arg1: i32) -> (i32, i32, i32) {
    %c0_i32 = arith.constant 0 : i32
    %c0_i32_0 = arith.constant 0 : i32
    return %arg0, %c0_i32, %arg1 : i32, i32, i32
  }
}

</mosaic_0001>

<llo_original>
// kernel: stacked_rnn_forward.1
$region0: #{stacked_rnn_forward.1}
  #allocation0 [shape = 'u32[]', space=smem, size = 0x4, offset = 0x4, fixed_abs, tag = 'smem constant byte address 0x4 - core index']
  #allocation1 [shape = 'u32[144,128]{1,0:T(1,128)}', space=vmem, size = 0x12000, scoped, tag = 'internal scratch']
  #allocation2 [shape = 'f32[8,256]{1,0:T(8,128)}', space=vmem, size = 0x2000, scoped, tag = 'scratch operand']
  #allocation3 [shape = 'f32[8,128]{1,0:T(8,128)}', space=vmem, size = 0x1000, scoped, tag = 'scratch operand']
  %s0 = inlined_call_operand.vmem [shape: f32[8,512], index: 0, kind: input, shape index: {}]
  %s1 = inlined_call_operand.vmem [shape: f32[3,8,128], index: 1, kind: input, shape index: {}]
  %s2 = inlined_call_operand.vmem [shape: f32[3,8,128], index: 2, kind: input, shape index: {}]
  %s3 = inlined_call_operand.hbm [shape: f32[3,256,512], index: 3, kind: input, shape index: {}]
  %s4 = inlined_call_operand.hbm [shape: f32[3,1,512], index: 4, kind: input, shape index: {}]
  %s5 = inlined_call_operand.vmem [shape: f32[3,8,128], index: 5, kind: output, shape index: {0}]
  %s6 = inlined_call_operand.hbm [shape: f32[3,8,128], index: 6, kind: output, shape index: {1}]
  %7 = xla_tuple %s5, %s6
  %s8 = sld [smem:[#allocation0]]
  $region85: #{stacked_rnn_forward.1} parent=0
    _
  %s10 = ssub.s32 1, %s8
  %s11 = scalar_select 0, %s10, %s8
  $region1: #{stacked_rnn_forward.1} parent=0
    #allocation4 [shape = 'u8[1048576]{0}', space=vmem, size = 0x100000, scoped, tag = 'input window, operand 3']
    #allocation5 [shape = 's32[2]{0}', space=sflag, size = 0x8, scoped, tag = 'scoped memory for stacked_rnn_forward.1']
    #allocation6 [shape = 's32[2]{0}', space=sflag, size = 0x8, scoped, tag = 'scoped memory for stacked_rnn_forward.1']
    #allocation7 [shape = 'u8[4096]{0}', space=vmem, size = 0x1000, scoped, tag = 'input window, operand 4']
    #allocation8 [shape = 's32[2]{0}', space=sflag, size = 0x8, scoped, tag = 'scoped memory for stacked_rnn_forward.1']
    #allocation9 [shape = 'u8[8192]{0}', space=vmem, size = 0x2000, scoped, tag = 'output window, operand 1']
    %12 = vsyncpa [#allocation5], 0
    %s13 = scalar_lea.sflag [#allocation5], 1
    %14 = vsyncpa %s13, 0
    %15 = vsyncpa [#allocation8], 0
    %s16 = scalar_lea.sflag [#allocation8], 1
    %17 = vsyncpa %s16, 0
    %18 = vsyncpa [#allocation6], 0
    %s19 = scalar_lea.sflag [#allocation6], 1
    %20 = vsyncpa %s19, 0
    loop: start=0, step=1, limit=5
    $region2: #{stacked_rnn_forward.1} parent=1 // loop_pre_header
      _
    $region3: #{stacked_rnn_forward.1} parent=1 // loop_header
      %s22 = sphi 0, %s26
      %p23 = scmp.ge.s32.totalorder %s22, 5
      %s29 = sphi 0, %s41
      %s30 = sphi 0, %s37
      %s31 = sphi 0, %s29
      %s32 = sphi 0, %s30
      %s33 = sphi 0, %s31
      %s34 = sphi 0, %s32
      %s42 = sphi 0, %s42
      %s44 = sphi 0, %s42
      %s45 = sphi 0, %s44
      %s59 = sphi 0, %s45
      %s65 = sphi 0, %s67
      %s68 = sphi 0, %s65
      %s69 = sphi 0, %s68
      %s85 = sphi 0, %s69
      %s93 = sphi 0, %s95
      %s96 = sphi 0, %s93
      %s97 = sphi 0, %s96
      %s113 = sphi 0, %s97
      %s121 = sphi 0, %s123
      %s124 = sphi 0, %s121
      %s125 = sphi 0, %s124
      %s141 = sphi 0, %s125
      %s149 = sphi 0, %s151
      %s152 = sphi 0, %s149
      %s153 = sphi 0, %s152
      %s169 = sphi 0, %s153
      %s177 = sphi 0, %s179
      %s180 = sphi 0, %s177
      %s181 = sphi 0, %s180
      %s197 = sphi 0, %s181
      %s205 = sphi 0, %s207
      %s208 = sphi 0, %s205
      %s209 = sphi 0, %s208
      %s225 = sphi 0, %s209
    $region4: #{stacked_rnn_forward.1} parent=1 // loop_header_branch
      %25 = sbr.rel (%p23) target = $region8
    $region5: #{stacked_rnn_forward.1} parent=1 // loop_body
      %s27 = ssub.s32 %s22, 1
      %s28 = ssub.s32 %s22, 2
      %s35 = sadd.s32 1, %s30
      %p36 = scmp.ge.s32.totalorder %s35, 1
      %s37 = scalar_select %p36, 0, %s35
      %s38 = sadd.s32 1, %s29
      %s39 = scalar_select %p36, %s38, %s29
      %p40 = scmp.ge.s32.totalorder %s39, 3
      %s41 = scalar_select %p40, 0, %s39
      %s43 = sadd.s32 %s42, 1
      %p46 = scmp.eq.s32.totalorder %s22, 2
      %p47 = scmp.ne.s32.totalorder %s42, %s44
      %p48 = scmp.eq.s32.totalorder %s22, 0
      %p49 = por %p47, %p48
      %p50 = scmp.ne.s32.totalorder %s42, %s44
      %p51 = scmp.eq.s32.totalorder %s27, 2
      %p52 = por %p50, %p51
      %p53 = scmp.ne.s32.totalorder %s44, %s45
      %p54 = scmp.eq.s32.totalorder %s27, 0
      %p55 = por %p53, %p54
      %p56 = scmp.ne.s32.totalorder %s44, %s45
      %p57 = scmp.eq.s32.totalorder %s28, 2
      %p58 = por %p56, %p57
      %p60 = scmp.ne.s32.totalorder %s45, %s59
      %p61 = scmp.eq.s32.totalorder %s28, 0
      %p62 = por %p60, %p61
      %s63 = ssub.s32 %s29, %s41
      %p64 = scmp.eq.s32.totalorder %s63, 0
      %s66 = sadd.s32 %s65, 1
      %s67 = scalar_select %p64, %s65, %s66
      %p70 = pneg %p64
      %p71 = scmp.eq.s32.totalorder %s22, 2
      %p72 = por %p70, %p71
      %p73 = scmp.ne.s32.totalorder %s65, %s68
      %p74 = scmp.eq.s32.totalorder %s22, 0
      %p75 = por %p73, %p74
      %p76 = scmp.ne.s32.totalorder %s65, %s68
      %p77 = scmp.eq.s32.totalorder %s27, 2
      %p78 = por %p76, %p77
      %p79 = scmp.ne.s32.totalorder %s68, %s69
      %p80 = scmp.eq.s32.totalorder %s27, 0
      %p81 = por %p79, %p80
      %p82 = scmp.ne.s32.totalorder %s68, %s69
      %p83 = scmp.eq.s32.totalorder %s28, 2
      %p84 = por %p82, %p83
      %p86 = scmp.ne.s32.totalorder %s69, %s85
      %p87 = scmp.eq.s32.totalorder %s28, 0
      %p88 = por %p86, %p87
      %s89 = ssub.s32 %s29, %s41
      %s90 = ssub.s32 %s30, %s37
      %s91 = sor.u32 %s89, %s90
      %p92 = scmp.eq.s32.totalorder %s91, 0
      %s94 = sadd.s32 %s93, 1
      %s95 = scalar_select %p92, %s93, %s94
      %p98 = pneg %p92
      %p99 = scmp.eq.s32.totalorder %s22, 2
      %p100 = por %p98, %p99
      %p101 = scmp.ne.s32.totalorder %s93, %s96
      %p102 = scmp.eq.s32.totalorder %s22, 0
      %p103 = por %p101, %p102
      %p104 = scmp.ne.s32.totalorder %s93, %s96
      %p105 = scmp.eq.s32.totalorder %s27, 2
      %p106 = por %p104, %p105
      %p107 = scmp.ne.s32.totalorder %s96, %s97
      %p108 = scmp.eq.s32.totalorder %s27, 0
      %p109 = por %p107, %p108
      %p110 = scmp.ne.s32.totalorder %s96, %s97
      %p111 = scmp.eq.s32.totalorder %s28, 2
      %p112 = por %p110, %p111
      %p114 = scmp.ne.s32.totalorder %s97, %s113
      %p115 = scmp.eq.s32.totalorder %s28, 0
      %p116 = por %p114, %p115
      %s117 = ssub.s32 %s29, %s41
      %s118 = ssub.s32 %s30, %s37
      %s119 = sor.u32 %s117, %s118
      %p120 = scmp.eq.s32.totalorder %s119, 0
      %s122 = sadd.s32 %s121, 1
      %s123 = scalar_select %p120, %s121, %s122
      %p126 = pneg %p120
      %p127 = scmp.eq.s32.totalorder %s22, 2
      %p128 = por %p126, %p127
      %p129 = scmp.ne.s32.totalorder %s121, %s124
      %p130 = scmp.eq.s32.totalorder %s22, 0
      %p131 = por %p129, %p130
      %p132 = scmp.ne.s32.totalorder %s121, %s124
      %p133 = scmp.eq.s32.totalorder %s27, 2
      %p134 = por %p132, %p133
      %p135 = scmp.ne.s32.totalorder %s124, %s125
      %p136 = scmp.eq.s32.totalorder %s27, 0
      %p137 = por %p135, %p136
      %p138 = scmp.ne.s32.totalorder %s124, %s125
      %p139 = scmp.eq.s32.totalorder %s28, 2
      %p140 = por %p138, %p139
      %p142 = scmp.ne.s32.totalorder %s125, %s141
      %p143 = scmp.eq.s32.totalorder %s28, 0
      %p144 = por %p142, %p143
      %s145 = ssub.s32 %s29, %s41
      %s146 = ssub.s32 %s30, %s37
      %s147 = sor.u32 %s145, %s146
      %p148 = scmp.eq.s32.totalorder %s147, 0
      %s150 = sadd.s32 %s149, 1
      %s151 = scalar_select %p148, %s149, %s150
      %p154 = pneg %p148
      %p155 = scmp.eq.s32.totalorder %s22, 2
      %p156 = por %p154, %p155
      %p157 = scmp.ne.s32.totalorder %s149, %s152
      %p158 = scmp.eq.s32.totalorder %s22, 0
      %p159 = por %p157, %p158
      %p160 = scmp.ne.s32.totalorder %s149, %s152
      %p161 = scmp.eq.s32.totalorder %s27, 2
      %p162 = por %p160, %p161
      %p163 = scmp.ne.s32.totalorder %s152, %s153
      %p164 = scmp.eq.s32.totalorder %s27, 0
      %p165 = por %p163, %p164
      %p166 = scmp.ne.s32.totalorder %s152, %s153
      %p167 = scmp.eq.s32.totalorder %s28, 2
      %p168 = por %p166, %p167
      %p170 = scmp.ne.s32.totalorder %s153, %s169
      %p171 = scmp.eq.s32.totalorder %s28, 0
      %p172 = por %p170, %p171
      %s173 = ssub.s32 %s29, %s41
      %s174 = ssub.s32 %s30, %s37
      %s175 = sor.u32 %s173, %s174
      %p176 = scmp.eq.s32.totalorder %s175, 0
      %s178 = sadd.s32 %s177, 1
      %s179 = scalar_select %p176, %s177, %s178
      %p182 = pneg %p176
      %p183 = scmp.eq.s32.totalorder %s22, 2
      %p184 = por %p182, %p183
      %p185 = scmp.ne.s32.totalorder %s177, %s180
      %p186 = scmp.eq.s32.totalorder %s22, 0
      %p187 = por %p185, %p186
      %p188 = scmp.ne.s32.totalorder %s177, %s180
      %p189 = scmp.eq.s32.totalorder %s27, 2
      %p190 = por %p188, %p189
      %p191 = scmp.ne.s32.totalorder %s180, %s181
      %p192 = scmp.eq.s32.totalorder %s27, 0
      %p193 = por %p191, %p192
      %p194 = scmp.ne.s32.totalorder %s180, %s181
      %p195 = scmp.eq.s32.totalorder %s28, 2
      %p196 = por %p194, %p195
      %p198 = scmp.ne.s32.totalorder %s181, %s197
      %p199 = scmp.eq.s32.totalorder %s28, 0
      %p200 = por %p198, %p199
      %s201 = ssub.s32 %s29, %s41
      %s202 = ssub.s32 %s30, %s37
      %s203 = sor.u32 %s201, %s202
      %p204 = scmp.eq.s32.totalorder %s203, 0
      %s206 = sadd.s32 %s205, 1
      %s207 = scalar_select %p204, %s205, %s206
      %p210 = pneg %p204
      %p211 = scmp.eq.s32.totalorder %s22, 2
      %p212 = por %p210, %p211
      %p213 = scmp.ne.s32.totalorder %s205, %s208
      %p214 = scmp.eq.s32.totalorder %s22, 0
      %p215 = por %p213, %p214
      %p216 = scmp.ne.s32.totalorder %s205, %s208
      %p217 = scmp.eq.s32.totalorder %s27, 2
      %p218 = por %p216, %p217
      %p219 = scmp.ne.s32.totalorder %s208, %s209
      %p220 = scmp.eq.s32.totalorder %s27, 0
      %p221 = por %p219, %p220
      %p222 = scmp.ne.s32.totalorder %s208, %s209
      %p223 = scmp.eq.s32.totalorder %s28, 2
      %p224 = por %p222, %p223
      %p226 = scmp.ne.s32.totalorder %s209, %s225
      %p227 = scmp.eq.s32.totalorder %s28, 0
      %p228 = por %p226, %p227
      %p229 = scmp.le.s32.totalorder 1, %s22
      %p230 = scmp.lt.s32.totalorder %s22, 4
      %p231 = pnand %p229, %p230
      %p232 = pneg %p231
      // Predicated region
      $region9: #{stacked_rnn_forward.1} parent=5 // pred_check
        _
      $region10: #{stacked_rnn_forward.1} parent=5 // pred_check_branch
        %234 = sbr.rel (%p231) target = $region12
      $region11: #{stacked_rnn_forward.1} parent=5 // pred_region
        %s235 = ssub.s32 %s22, 1
        // Predicated region
        $region13: #{stacked_rnn_forward.1} parent=11 // pred_check
          %p236 = pneg %p55
        $region14: #{stacked_rnn_forward.1} parent=11 // pred_check_branch
          %238 = sbr.rel (%p236) target = $region16
        $region15: #{stacked_rnn_forward.1} parent=11 // pred_region
          _
        $region16: #{stacked_rnn_forward.1} parent=11 // pred_fallthru
          _
      $region12: #{stacked_rnn_forward.1} parent=5 // pred_fallthru
        _
      %p239 = scmp.lt.s32.totalorder %s22, 3
      // Predicated region
      $region17: #{stacked_rnn_forward.1} parent=5 // pred_check
        %p240 = pneg %p239
      $region18: #{stacked_rnn_forward.1} parent=5 // pred_check_branch
        %242 = sbr.rel (%p240) target = $region20
      $region19: #{stacked_rnn_forward.1} parent=5 // pred_region
        // Predicated region
        $region21: #{stacked_rnn_forward.1} parent=19 // pred_check
          %p243 = pneg %p75
        $region22: #{stacked_rnn_forward.1} parent=19 // pred_check_branch
          %245 = sbr.rel (%p243) target = $region24
        $region23: #{stacked_rnn_forward.1} parent=19 // pred_region
          %p246 = scmp.lt.s32.totalorder %s29, 2
          %s247 = scalar_select %p246, %s29, 2
          %s248 = smul.addr %s247, 8
          %s249 = scalar_lea.vmem %s1, %s248
        $region24: #{stacked_rnn_forward.1} parent=19 // pred_fallthru
          _
        // Predicated region
        $region25: #{stacked_rnn_forward.1} parent=19 // pred_check
          %p250 = pneg %p103
        $region26: #{stacked_rnn_forward.1} parent=19 // pred_check_branch
          %252 = sbr.rel (%p250) target = $region28
        $region27: #{stacked_rnn_forward.1} parent=19 // pred_region
          %p253 = scmp.lt.s32.totalorder %s29, 2
          %s254 = scalar_select %p253, %s29, 2
          %p255 = scmp.lt.s32.totalorder %s30, 0
          %s256 = scalar_select %p255, %s30, 0
          %s257 = sadd.s32 %s256, %s254
          %s258 = smul.addr %s257, 8
          %s259 = scalar_lea.vmem %s2, %s258
        $region28: #{stacked_rnn_forward.1} parent=19 // pred_fallthru
          _
        // Predicated region
        $region29: #{stacked_rnn_forward.1} parent=19 // pred_check
          %p260 = pneg %p131
        $region30: #{stacked_rnn_forward.1} parent=19 // pred_check_branch
          %262 = sbr.rel (%p260) target = $region32
        $region31: #{stacked_rnn_forward.1} parent=19 // pred_region
          %s263 = sand.u32 %s121, 1
          %s264 = scalar_lea.sflag [#allocation5], %s263
          %s265 = sand.u32 %s121, 1
          %s266 = smul.addr %s265, 1024
          %s267 = scalar_lea.vmem [#allocation4], %s266
          %s268 = smul.u32 4, %s30
          %s270 = ssub.s32 16384, 16384
          %271 = vsyncadd %s264, %s270
          %s272 = smul.addr %s29, 128
          %s273 = sadd.s32 %s268, %s272
          %s274 = smul.addr %s273, 128
          %s275 = scalar_lea.hbm %s3, %s274
          %s276 = sshll.u32 %s267, 4
          %s277 = int_to_ptr.vmem [resolvable:$true] %s276
          %282 = dma.hbm_to_vmem [thread:$0]  %s275, 16384, %s277, %s264, 512, 512, 32
        $region32: #{stacked_rnn_forward.1} parent=19 // pred_fallthru
          _
        // Predicated region
        $region33: #{stacked_rnn_forward.1} parent=19 // pred_check
          %p283 = pneg %p159
        $region34: #{stacked_rnn_forward.1} parent=19 // pred_check_branch
          %285 = sbr.rel (%p283) target = $region36
        $region35: #{stacked_rnn_forward.1} parent=19 // pred_region
          %s286 = sand.u32 %s149, 1
          %s287 = scalar_lea.sflag [#allocation8], %s286
          %s288 = sand.u32 %s149, 1
          %s289 = smul.addr %s288, 4
          %s290 = scalar_lea.vmem [#allocation7], %s289
          %s291 = smul.u32 4, %s30
          %s293 = ssub.s32 64, 64
          %294 = vsyncadd %s287, %s293
          %s295 = smul.addr %s29, 4
          %s296 = sadd.s32 %s291, %s295
          %s297 = smul.addr %s296, 16
          %s298 = scalar_lea.hbm %s4, %s297
          %s300 = sshll.u32 %s290, 4
          %s301 = int_to_ptr.vmem [resolvable:$true] %s300
          %303 = dma.hbm_to_vmem [thread:$0]  %s298, 64, %s301, %s287
        $region36: #{stacked_rnn_forward.1} parent=19 // pred_fallthru
          _
      $region20: #{stacked_rnn_forward.1} parent=5 // pred_fallthru
        _
      %p304 = scmp.le.s32.totalorder 1, %s22
      %p305 = scmp.lt.s32.totalorder %s22, 4
      %p306 = pnand %p304, %p305
      %p307 = pneg %p306
      // Predicated region
      $region37: #{stacked_rnn_forward.1} parent=5 // pred_check
        _
      $region38: #{stacked_rnn_forward.1} parent=5 // pred_check_branch
        %309 = sbr.rel (%p306) target = $region40
      $region39: #{stacked_rnn_forward.1} parent=5 // pred_region
        %s310 = ssub.s32 %s22, 1
        %s311 = sand.u32 %s124, 1
        %s312 = scalar_lea.sflag [#allocation5], %s311
        %s313 = sand.u32 %s124, 1
        %s314 = smul.addr %s313, 1024
        %s315 = scalar_lea.vmem [#allocation4], %s314
        // Predicated region
        $region41: #{stacked_rnn_forward.1} parent=39 // pred_check
          %p316 = pneg %p137
        $region42: #{stacked_rnn_forward.1} parent=39 // pred_check_branch
          %318 = sbr.rel (%p316) target = $region44
        $region43: #{stacked_rnn_forward.1} parent=39 // pred_region
          %319 = dma.done %s312, 16384
        $region44: #{stacked_rnn_forward.1} parent=39 // pred_fallthru
          _
        %s320 = sand.u32 %s152, 1
        %s321 = scalar_lea.sflag [#allocation8], %s320
        %s322 = sand.u32 %s152, 1
        %s323 = smul.addr %s322, 4
        %s324 = scalar_lea.vmem [#allocation7], %s323
        // Predicated region
        $region45: #{stacked_rnn_forward.1} parent=39 // pred_check
          %p325 = pneg %p165
        $region46: #{stacked_rnn_forward.1} parent=39 // pred_check_branch
          %327 = sbr.rel (%p325) target = $region48
        $region47: #{stacked_rnn_forward.1} parent=39 // pred_region
          %328 = dma.done %s321, 64
        $region48: #{stacked_rnn_forward.1} parent=39 // pred_fallthru
          _
        %p329 = pneg %p55
        %p330 = pneg %p52
        %p331 = scmp.lt.s32.totalorder %s31, 2
        %s332 = scalar_select %p331, %s31, 2
        %s333 = smul.addr %s332, 8
        %s334 = scalar_lea.vmem %s1, %s333
        %p335 = pneg %p81
        %p336 = pneg %p78
        %p337 = scmp.lt.s32.totalorder %s31, 2
        %s338 = scalar_select %p337, %s31, 2
        %p339 = scmp.lt.s32.totalorder %s32, 0
        %s340 = scalar_select %p339, %s32, 0
        %s341 = sadd.s32 %s340, %s338
        %s342 = smul.addr %s341, 8
        %s343 = scalar_lea.vmem %s2, %s342
        %p344 = pneg %p109
        %p345 = pneg %p106
        %s346 = sand.u32 %s124, 1
        %s347 = scalar_lea.sflag [#allocation5], %s346
        %s348 = sand.u32 %s124, 1
        %s349 = smul.addr %s348, 1024
        %s350 = scalar_lea.vmem [#allocation4], %s349
        %p351 = pneg %p137
        %p352 = pneg %p134
        %s353 = sand.u32 %s152, 1
        %s354 = scalar_lea.sflag [#allocation8], %s353
        %s355 = sand.u32 %s152, 1
        %s356 = smul.addr %s355, 4
        %s357 = scalar_lea.vmem [#allocation7], %s356
        %p358 = pneg %p165
        %p359 = pneg %p162
        %p360 = pneg %p193
        %p361 = pneg %p190
        %p362 = scmp.lt.s32.totalorder %s31, 2
        %s363 = scalar_select %p362, %s31, 2
        %p364 = scmp.lt.s32.totalorder %s32, 0
        %s365 = scalar_select %p364, %s32, 0
        %s366 = sadd.s32 %s365, %s363
        %s367 = smul.addr %s366, 8
        %s368 = scalar_lea.vmem %s5, %s367
        %p369 = pneg %p221
        %p370 = pneg %p218
        %s371 = sand.u32 %s208, 1
        %s372 = scalar_lea.sflag [#allocation6], %s371
        %s373 = sand.u32 %s208, 1
        %s374 = smul.addr %s373, 8
        %s375 = scalar_lea.vmem [#allocation9], %s374
        %p376 = scmp.lt.s32.totalorder %s31, 2
        %s377 = scalar_select %p376, %s31, 2
        %s378 = smul.addr %s377, 8
        %s379 = scalar_lea.vmem %s1, %s378
        %p380 = scmp.lt.s32.totalorder %s31, 2
        %s381 = scalar_select %p380, %s31, 2
        %p382 = scmp.lt.s32.totalorder %s32, 0
        %s383 = scalar_select %p382, %s32, 0
        %s384 = sadd.s32 %s383, %s381
        %s385 = smul.addr %s384, 8
        %s386 = scalar_lea.vmem %s2, %s385
        %s387 = smul.u32 4, %s32
        %s388 = smul.u32 4, %s32
        %p389 = scmp.lt.s32.totalorder %s31, 2
        %s390 = scalar_select %p389, %s31, 2
        %p391 = scmp.lt.s32.totalorder %s32, 0
        %s392 = scalar_select %p391, %s32, 0
        %s393 = sadd.s32 %s392, %s390
        %s394 = smul.addr %s393, 8
        %s395 = scalar_lea.vmem %s5, %s394
        %p396 = scmp.eq.s32.totalorder %s32, 0
        // Predicated region
        $region49: #{stacked_rnn_forward.1} parent=39 // pred_check
          %p397 = pneg %p396
        $region50: #{stacked_rnn_forward.1} parent=39 // pred_check_branch
          %399 = sbr.rel (%p397) target = $region52
        $region51: #{stacked_rnn_forward.1} parent=39 // pred_region
          %v400 = vld [vmem:[%s379] sm:$0xff]
          %401 = vst [vmem:[#allocation2 + $0x8] sm:$0xff] %v400
        $region52: #{stacked_rnn_forward.1} parent=39 // pred_fallthru
          _
        %p402 = scmp.eq.s32.totalorder %s31, 0
        %p403 = pnand %p396, %p402
        %p404 = pneg %p403
        // Predicated region
        $region53: #{stacked_rnn_forward.1} parent=39 // pred_check
          _
        $region54: #{stacked_rnn_forward.1} parent=39 // pred_check_branch
          %406 = sbr.rel (%p403) target = $region56
        $region55: #{stacked_rnn_forward.1} parent=39 // pred_region
          %407 = vst [vmem:[#allocation2] sm:$0xff] 0.0
        $region56: #{stacked_rnn_forward.1} parent=39 // pred_fallthru
          _
        %p408 = scmp.gt.s32.totalorder %s31, 0
        %p409 = pnand %p396, %p408
        %p410 = pneg %p409
        // Predicated region
        $region57: #{stacked_rnn_forward.1} parent=39 // pred_check
          _
        $region58: #{stacked_rnn_forward.1} parent=39 // pred_check_branch
          %412 = sbr.rel (%p409) target = $region60
        $region59: #{stacked_rnn_forward.1} parent=39 // pred_region
          %v413 = vld [vmem:[#allocation3] sm:$0xff]
          %414 = vst [vmem:[#allocation2] sm:$0xff] %v413
        $region60: #{stacked_rnn_forward.1} parent=39 // pred_fallthru
          _
        %v415 = vld [vmem:[#allocation2] sm:$0xff]
        %v416 = vld [vmem:[#allocation2 + $0x8] sm:$0xff]
        %v417 = vld [vmem:[%s315] sm:$0xff]
        %v418 = vld [vmem:[%s315 + $0x8] sm:$0xff]
        %v419 = vld [vmem:[%s315 + $0x10] sm:$0xff]
        %v420 = vld [vmem:[%s315 + $0x18] sm:$0xff]
        %v421 = vld [vmem:[%s315 + $0x20] sm:$0xff]
        %v422 = vld [vmem:[%s315 + $0x28] sm:$0xff]
        %v423 = vld [vmem:[%s315 + $0x30] sm:$0xff]
        %v424 = vld [vmem:[%s315 + $0x38] sm:$0xff]
        %v425 = vld [vmem:[%s315 + $0x40] sm:$0xff]
        %v426 = vld [vmem:[%s315 + $0x48] sm:$0xff]
        %v427 = vld [vmem:[%s315 + $0x50] sm:$0xff]
        %v428 = vld [vmem:[%s315 + $0x58] sm:$0xff]
        %v429 = vld [vmem:[%s315 + $0x60] sm:$0xff]
        %v430 = vld [vmem:[%s315 + $0x68] sm:$0xff]
        %v431 = vld [vmem:[%s315 + $0x70] sm:$0xff]
        %v432 = vld [vmem:[%s315 + $0x78] sm:$0xff]
        %v433 = vld [vmem:[%s315 + $0x80] sm:$0xff]
        %v434 = vld [vmem:[%s315 + $0x88] sm:$0xff]
        %v435 = vld [vmem:[%s315 + $0x90] sm:$0xff]
        %v436 = vld [vmem:[%s315 + $0x98] sm:$0xff]
        %v437 = vld [vmem:[%s315 + $0xa0] sm:$0xff]
        %v438 = vld [vmem:[%s315 + $0xa8] sm:$0xff]
        %v439 = vld [vmem:[%s315 + $0xb0] sm:$0xff]
        %v440 = vld [vmem:[%s315 + $0xb8] sm:$0xff]
        %v441 = vld [vmem:[%s315 + $0xc0] sm:$0xff]
        %v442 = vld [vmem:[%s315 + $0xc8] sm:$0xff]
        %v443 = vld [vmem:[%s315 + $0xd0] sm:$0xff]
        %v444 = vld [vmem:[%s315 + $0xd8] sm:$0xff]
        %v445 = vld [vmem:[%s315 + $0xe0] sm:$0xff]
        %v446 = vld [vmem:[%s315 + $0xe8] sm:$0xff]
        %v447 = vld [vmem:[%s315 + $0xf0] sm:$0xff]
        %v448 = vld [vmem:[%s315 + $0xf8] sm:$0xff]
        %v449 = vld [vmem:[%s315 + $0x100] sm:$0xff]
        %v450 = vld [vmem:[%s315 + $0x108] sm:$0xff]
        %v451 = vld [vmem:[%s315 + $0x110] sm:$0xff]
        %v452 = vld [vmem:[%s315 + $0x118] sm:$0xff]
        %v453 = vld [vmem:[%s315 + $0x120] sm:$0xff]
        %v454 = vld [vmem:[%s315 + $0x128] sm:$0xff]
        %v455 = vld [vmem:[%s315 + $0x130] sm:$0xff]
        %v456 = vld [vmem:[%s315 + $0x138] sm:$0xff]
        %v457 = vld [vmem:[%s315 + $0x140] sm:$0xff]
        %v458 = vld [vmem:[%s315 + $0x148] sm:$0xff]
        %v459 = vld [vmem:[%s315 + $0x150] sm:$0xff]
        %v460 = vld [vmem:[%s315 + $0x158] sm:$0xff]
        %v461 = vld [vmem:[%s315 + $0x160] sm:$0xff]
        %v462 = vld [vmem:[%s315 + $0x168] sm:$0xff]
        %v463 = vld [vmem:[%s315 + $0x170] sm:$0xff]
        %v464 = vld [vmem:[%s315 + $0x178] sm:$0xff]
        %v465 = vld [vmem:[%s315 + $0x180] sm:$0xff]
        %v466 = vld [vmem:[%s315 + $0x188] sm:$0xff]
        %v467 = vld [vmem:[%s315 + $0x190] sm:$0xff]
        %v468 = vld [vmem:[%s315 + $0x198] sm:$0xff]
        %v469 = vld [vmem:[%s315 + $0x1a0] sm:$0xff]
        %v470 = vld [vmem:[%s315 + $0x1a8] sm:$0xff]
        %v471 = vld [vmem:[%s315 + $0x1b0] sm:$0xff]
        %v472 = vld [vmem:[%s315 + $0x1b8] sm:$0xff]
        %v473 = vld [vmem:[%s315 + $0x1c0] sm:$0xff]
        %v474 = vld [vmem:[%s315 + $0x1c8] sm:$0xff]
        %v475 = vld [vmem:[%s315 + $0x1d0] sm:$0xff]
        %v476 = vld [vmem:[%s315 + $0x1d8] sm:$0xff]
        %v477 = vld [vmem:[%s315 + $0x1e0] sm:$0xff]
        %v478 = vld [vmem:[%s315 + $0x1e8] sm:$0xff]
        %v479 = vld [vmem:[%s315 + $0x1f0] sm:$0xff]
        %v480 = vld [vmem:[%s315 + $0x1f8] sm:$0xff]
        %v481 = vld [vmem:[%s315 + $0x200] sm:$0xff]
        %v482 = vld [vmem:[%s315 + $0x208] sm:$0xff]
        %v483 = vld [vmem:[%s315 + $0x210] sm:$0xff]
        %v484 = vld [vmem:[%s315 + $0x218] sm:$0xff]
        %v485 = vld [vmem:[%s315 + $0x220] sm:$0xff]
        %v486 = vld [vmem:[%s315 + $0x228] sm:$0xff]
        %v487 = vld [vmem:[%s315 + $0x230] sm:$0xff]
        %v488 = vld [vmem:[%s315 + $0x238] sm:$0xff]
        %v489 = vld [vmem:[%s315 + $0x240] sm:$0xff]
        %v490 = vld [vmem:[%s315 + $0x248] sm:$0xff]
        %v491 = vld [vmem:[%s315 + $0x250] sm:$0xff]
        %v492 = vld [vmem:[%s315 + $0x258] sm:$0xff]
        %v493 = vld [vmem:[%s315 + $0x260] sm:$0xff]
        %v494 = vld [vmem:[%s315 + $0x268] sm:$0xff]
        %v495 = vld [vmem:[%s315 + $0x270] sm:$0xff]
        %v496 = vld [vmem:[%s315 + $0x278] sm:$0xff]
        %v497 = vld [vmem:[%s315 + $0x280] sm:$0xff]
        %v498 = vld [vmem:[%s315 + $0x288] sm:$0xff]
        %v499 = vld [vmem:[%s315 + $0x290] sm:$0xff]
        %v500 = vld [vmem:[%s315 + $0x298] sm:$0xff]
        %v501 = vld [vmem:[%s315 + $0x2a0] sm:$0xff]
        %v502 = vld [vmem:[%s315 + $0x2a8] sm:$0xff]
        %v503 = vld [vmem:[%s315 + $0x2b0] sm:$0xff]
        %v504 = vld [vmem:[%s315 + $0x2b8] sm:$0xff]
        %v505 = vld [vmem:[%s315 + $0x2c0] sm:$0xff]
        %v506 = vld [vmem:[%s315 + $0x2c8] sm:$0xff]
        %v507 = vld [vmem:[%s315 + $0x2d0] sm:$0xff]
        %v508 = vld [vmem:[%s315 + $0x2d8] sm:$0xff]
        %v509 = vld [vmem:[%s315 + $0x2e0] sm:$0xff]
        %v510 = vld [vmem:[%s315 + $0x2e8] sm:$0xff]
        %v511 = vld [vmem:[%s315 + $0x2f0] sm:$0xff]
        %v512 = vld [vmem:[%s315 + $0x2f8] sm:$0xff]
        %v513 = vld [vmem:[%s315 + $0x300] sm:$0xff]
        %v514 = vld [vmem:[%s315 + $0x308] sm:$0xff]
        %v515 = vld [vmem:[%s315 + $0x310] sm:$0xff]
        %v516 = vld [vmem:[%s315 + $0x318] sm:$0xff]
        %v517 = vld [vmem:[%s315 + $0x320] sm:$0xff]
        %v518 = vld [vmem:[%s315 + $0x328] sm:$0xff]
        %v519 = vld [vmem:[%s315 + $0x330] sm:$0xff]
        %v520 = vld [vmem:[%s315 + $0x338] sm:$0xff]
        %v521 = vld [vmem:[%s315 + $0x340] sm:$0xff]
        %v522 = vld [vmem:[%s315 + $0x348] sm:$0xff]
        %v523 = vld [vmem:[%s315 + $0x350] sm:$0xff]
        %v524 = vld [vmem:[%s315 + $0x358] sm:$0xff]
        %v525 = vld [vmem:[%s315 + $0x360] sm:$0xff]
        %v526 = vld [vmem:[%s315 + $0x368] sm:$0xff]
        %v527 = vld [vmem:[%s315 + $0x370] sm:$0xff]
        %v528 = vld [vmem:[%s315 + $0x378] sm:$0xff]
        %v529 = vld [vmem:[%s315 + $0x380] sm:$0xff]
        %v530 = vld [vmem:[%s315 + $0x388] sm:$0xff]
        %v531 = vld [vmem:[%s315 + $0x390] sm:$0xff]
        %v532 = vld [vmem:[%s315 + $0x398] sm:$0xff]
        %v533 = vld [vmem:[%s315 + $0x3a0] sm:$0xff]
        %v534 = vld [vmem:[%s315 + $0x3a8] sm:$0xff]
        %v535 = vld [vmem:[%s315 + $0x3b0] sm:$0xff]
        %v536 = vld [vmem:[%s315 + $0x3b8] sm:$0xff]
        %v537 = vld [vmem:[%s315 + $0x3c0] sm:$0xff]
        %v538 = vld [vmem:[%s315 + $0x3c8] sm:$0xff]
        %v539 = vld [vmem:[%s315 + $0x3d0] sm:$0xff]
        %v540 = vld [vmem:[%s315 + $0x3d8] sm:$0xff]
        %v541 = vld [vmem:[%s315 + $0x3e0] sm:$0xff]
        %v542 = vld [vmem:[%s315 + $0x3e8] sm:$0xff]
        %v543 = vld [vmem:[%s315 + $0x3f0] sm:$0xff]
        %v544 = vld [vmem:[%s315 + $0x3f8] sm:$0xff]
        %v545 = vld [vmem:[%s324] sm:$0xf]
        %v547 = vlaneseq
        %v548 = vshrl.u32 %v547, 7
        %v549 = vsub.s32 0, %v548
        %v550 = vrot.slane %v545, %v549
        %v551 = vlaneseq
        %v552 = vshrl.u32 %v551, 7
        %v553 = vsub.s32 1, %v552
        %v554 = vrot.slane %v545, %v553
        %v555 = vlaneseq
        %v556 = vshrl.u32 %v555, 7
        %v557 = vsub.s32 2, %v556
        %v558 = vrot.slane %v545, %v557
        %v559 = vlaneseq
        %v560 = vshrl.u32 %v559, 7
        %v561 = vsub.s32 3, %v560
        %v562 = vrot.slane %v545, %v561
        %567 = vmatprep.subr.mxu0 %v418
        %568 = vmatpush1.msra.mxu0 %v417
        %569 = vmatprep.subr.mxu0 %v422
        %570 = vmatpush1.msra.mxu0 %v421
        %571 = vmatprep.subr.mxu0 %v426
        %572 = vmatpush1.msra.mxu0 %v425
        %573 = vmatprep.subr.mxu0 %v430
        %574 = vmatpush1.msra.mxu0 %v429
        %575 = vmatprep.subr.mxu0 %v434
        %576 = vmatpush1.msra.mxu0 %v433
        %577 = vmatprep.subr.mxu0 %v438
        %578 = vmatpush1.msra.mxu0 %v437
        %579 = vmatprep.subr.mxu0 %v442
        %580 = vmatpush1.msra.mxu0 %v441
        %581 = vmatprep.subr.mxu0 %v446
        %582 = vmatpush1.msra.mxu0 %v445
        %583 = vmatprep.subr.mxu0 %v450
        %584 = vmatpush1.msra.mxu0 %v449
        %585 = vmatprep.subr.mxu0 %v454
        %586 = vmatpush1.msra.mxu0 %v453
        %587 = vmatprep.subr.mxu0 %v458
        %588 = vmatpush1.msra.mxu0 %v457
        %589 = vmatprep.subr.mxu0 %v462
        %590 = vmatpush1.msra.mxu0 %v461
        %591 = vmatprep.subr.mxu0 %v466
        %592 = vmatpush1.msra.mxu0 %v465
        %593 = vmatprep.subr.mxu0 %v470
        %594 = vmatpush1.msra.mxu0 %v469
        %595 = vmatprep.subr.mxu0 %v474
        %596 = vmatpush1.msra.mxu0 %v473
        %597 = vmatprep.subr.mxu0 %v478
        %598 = vmatpush1.msra.mxu0 %v477
        %599 = vmatprep.subr.mxu0 %v482
        %600 = vmatpush1.msra.mxu0 %v481
        %601 = vmatprep.subr.mxu0 %v486
        %602 = vmatpush1.msra.mxu0 %v485
        %603 = vmatprep.subr.mxu0 %v490
        %604 = vmatpush1.msra.mxu0 %v489
        %605 = vmatprep.subr.mxu0 %v494
        %606 = vmatpush1.msra.mxu0 %v493
        %607 = vmatprep.subr.mxu0 %v498
        %608 = vmatpush1.msra.mxu0 %v497
        %609 = vmatprep.subr.mxu0 %v502
        %610 = vmatpush1.msra.mxu0 %v501
        %611 = vmatprep.subr.mxu0 %v506
        %612 = vmatpush1.msra.mxu0 %v505
        %613 = vmatprep.subr.mxu0 %v510
        %614 = vmatpush1.msra.mxu0 %v509
        %615 = vmatprep.subr.mxu0 %v514
        %616 = vmatpush1.msra.mxu0 %v513
        %617 = vmatprep.subr.mxu0 %v518
        %618 = vmatpush1.msra.mxu0 %v517
        %619 = vmatprep.subr.mxu0 %v522
        %620 = vmatpush1.msra.mxu0 %v521
        %621 = vmatprep.subr.mxu0 %v526
        %622 = vmatpush1.msra.mxu0 %v525
        %623 = vmatprep.subr.mxu0 %v530
        %624 = vmatpush1.msra.mxu0 %v529
        %625 = vmatprep.subr.mxu0 %v534
        %626 = vmatpush1.msra.mxu0 %v533
        %627 = vmatprep.subr.mxu0 %v538
        %628 = vmatpush1.msra.mxu0 %v537
        %629 = vmatprep.subr.mxu0 %v542
        %630 = vmatpush1.msra.mxu0 %v541
        %631 = vmatprep.mubr.f32.mxu0 %v416
        %632 = vmatmul.mubr.f32.gmra.mrb[0].mxu0 %v415
        %v633 = vpop.f32.mrb[0].mxu0
        %v634 = vadd.f32 %v550, %v633
        %v635 = vpop.f32.mrb[0].mxu0
        %v636 = vadd.f32 %v554, %v635
        %637 = vdwg.mxu0
        %638 = vmatprep.subr.mxu0 %v420
        %639 = vmatpush1.msra.mxu0 %v419
        %640 = vmatprep.subr.mxu0 %v424
        %641 = vmatpush1.msra.mxu0 %v423
        %642 = vmatprep.subr.mxu0 %v428
        %643 = vmatpush1.msra.mxu0 %v427
        %644 = vmatprep.subr.mxu0 %v432
        %645 = vmatpush1.msra.mxu0 %v431
        %646 = vmatprep.subr.mxu0 %v436
        %647 = vmatpush1.msra.mxu0 %v435
        %648 = vmatprep.subr.mxu0 %v440
        %649 = vmatpush1.msra.mxu0 %v439
        %650 = vmatprep.subr.mxu0 %v444
        %651 = vmatpush1.msra.mxu0 %v443
        %652 = vmatprep.subr.mxu0 %v448
        %653 = vmatpush1.msra.mxu0 %v447
        %654 = vmatprep.subr.mxu0 %v452
        %655 = vmatpush1.msra.mxu0 %v451
        %656 = vmatprep.subr.mxu0 %v456
        %657 = vmatpush1.msra.mxu0 %v455
        %658 = vmatprep.subr.mxu0 %v460
        %659 = vmatpush1.msra.mxu0 %v459
        %660 = vmatprep.subr.mxu0 %v464
        %661 = vmatpush1.msra.mxu0 %v463
        %662 = vmatprep.subr.mxu0 %v468
        %663 = vmatpush1.msra.mxu0 %v467
        %664 = vmatprep.subr.mxu0 %v472
        %665 = vmatpush1.msra.mxu0 %v471
        %666 = vmatprep.subr.mxu0 %v476
        %667 = vmatpush1.msra.mxu0 %v475
        %668 = vmatprep.subr.mxu0 %v480
        %669 = vmatpush1.msra.mxu0 %v479
        %670 = vmatprep.subr.mxu0 %v484
        %671 = vmatpush1.msra.mxu0 %v483
        %672 = vmatprep.subr.mxu0 %v488
        %673 = vmatpush1.msra.mxu0 %v487
        %674 = vmatprep.subr.mxu0 %v492
        %675 = vmatpush1.msra.mxu0 %v491
        %676 = vmatprep.subr.mxu0 %v496
        %677 = vmatpush1.msra.mxu0 %v495
        %678 = vmatprep.subr.mxu0 %v500
        %679 = vmatpush1.msra.mxu0 %v499
        %680 = vmatprep.subr.mxu0 %v504
        %681 = vmatpush1.msra.mxu0 %v503
        %682 = vmatprep.subr.mxu0 %v508
        %683 = vmatpush1.msra.mxu0 %v507
        %684 = vmatprep.subr.mxu0 %v512
        %685 = vmatpush1.msra.mxu0 %v511
        %686 = vmatprep.subr.mxu0 %v516
        %687 = vmatpush1.msra.mxu0 %v515
        %688 = vmatprep.subr.mxu0 %v520
        %689 = vmatpush1.msra.mxu0 %v519
        %690 = vmatprep.subr.mxu0 %v524
        %691 = vmatpush1.msra.mxu0 %v523
        %692 = vmatprep.subr.mxu0 %v528
        %693 = vmatpush1.msra.mxu0 %v527
        %694 = vmatprep.subr.mxu0 %v532
        %695 = vmatpush1.msra.mxu0 %v531
        %696 = vmatprep.subr.mxu0 %v536
        %697 = vmatpush1.msra.mxu0 %v535
        %698 = vmatprep.subr.mxu0 %v540
        %699 = vmatpush1.msra.mxu0 %v539
        %700 = vmatprep.subr.mxu0 %v544
        %701 = vmatpush1.msra.mxu0 %v543
        %702 = vmatprep.mubr.f32.mxu0 %v416
        %703 = vmatmul.mubr.f32.gmra.mrb[0].mxu0 %v415
        %v704 = vpop.f32.mrb[0].mxu0
        %v705 = vadd.f32 %v558, %v704
        %v706 = vpop.f32.mrb[0].mxu0
        %v707 = vadd.f32 %v562, %v706
        %708 = vdwg.mxu0
        %s709 = smul.u32 %s32, 512
        %s710 = sshra.s32 %s709, 7
        %s711 = sand.u32 %s709, 127
        %s712 = smul.addr %s710, 8
        %s713 = scalar_lea.vmem %s0, %s712
        %v714 = vld [vmem:[%s713] sm:$0xff]
        %v715 = vld [vmem:[%s713 + $0x8] sm:$0xff]
        %v716 = vld [vmem:[%s713 + $0x10] sm:$0xff]
        %v717 = vld [vmem:[%s713 + $0x18] sm:$0xff]
        %s718 = scalar_select %p402, 1, 0
        %v719 = vstv %s718
        %vm720 = vcmp.eq.s32.totalorder %v719, 1
        %v721 = vsel %vm720, %v714, 0.0
        %v722 = vsel %vm720, %v715, 0.0
        %v723 = vsel %vm720, %v716, 0.0
        %v724 = vsel %vm720, %v717, 0.0
        %v725 = vadd.f32 %v634, %v721
        %v726 = vadd.f32 %v636, %v722
        %v727 = vadd.f32 %v705, %v723
        %v728 = vadd.f32 %v707, %v724
        %v729 = vxor.u32 %v725, 2147483648
        %v730 = vxor.u32 %v726, 2147483648
        %v731 = vxor.u32 %v727, 2147483648
        %v732 = vmul.f32 %v729, 1.442695
        %v733 = vpow.pop %v732
        %v734 = vmul.f32 %v730, 1.442695
        %v735 = vpow.pop %v734
        %v736 = vmul.f32 %v731, 1.442695
        %v737 = vpow.pop %v736
        %v738 = vadd.f32 %v733, 1.0
        %v739 = vadd.f32 %v735, 1.0
        %v740 = vadd.f32 %v737, 1.0
        %v741 = vrcp.pop %v738
        %v742 = vmul.f32 1.0, %v741
        %v743 = vrcp.pop %v739
        %v744 = vmul.f32 1.0, %v743
        %v745 = vrcp.pop %v740
        %v746 = vmul.f32 1.0, %v745
        %v747 = vtanh.pop %v728
        %v748 = vld [vmem:[%s386] sm:$0xff]
        %v749 = vmul.f32 %v744, %v748
        %v750 = vmul.f32 %v742, %v747
        %v751 = vadd.f32 %v749, %v750
        %v752 = vtanh.pop %v751
        %v753 = vmul.f32 %v746, %v752
        %754 = vst [vmem:[%s395] sm:$0xff] %v753
        %755 = vst [vmem:[%s375] sm:$0xff] %v751
        %s756 = sadd.s32 %s31, 1
        %p757 = scmp.lt.s32.totalorder %s756, 3
        // Predicated region
        $region61: #{stacked_rnn_forward.1} parent=39 // pred_check
          %p758 = pneg %p757
        $region62: #{stacked_rnn_forward.1} parent=39 // pred_check_branch
          %760 = sbr.rel (%p758) target = $region64
        $region63: #{stacked_rnn_forward.1} parent=39 // pred_region
          %s761 = smul.u32 %s32, 128
          %s762 = sshra.s32 %s761, 7
          %s763 = sand.u32 %s761, 127
          %s764 = scalar_lea.vmem [#allocation3], %s762
          %765 = vst [vmem:[%s764] sm:$0xff] %v753
        $region64: #{stacked_rnn_forward.1} parent=39 // pred_fallthru
          _
        %p766 = scmp.lt.s32.totalorder %s31, 2
        %s767 = scalar_select %p766, %s31, 2
        %p768 = scmp.lt.s32.totalorder %s32, 0
        %s769 = scalar_select %p768, %s32, 0
        %s770 = sadd.s32 %s769, %s767
        %s771 = smul.addr %s770, 8
        %s772 = scalar_lea.vmem %s5, %s771
        %s773 = sand.u32 %s208, 1
        %s774 = scalar_lea.sflag [#allocation6], %s773
        %s775 = sand.u32 %s208, 1
        %s776 = smul.addr %s775, 8
        %s777 = scalar_lea.vmem [#allocation9], %s776
        // Predicated region
        $region65: #{stacked_rnn_forward.1} parent=39 // pred_check
          %p778 = pneg %p190
        $region66: #{stacked_rnn_forward.1} parent=39 // pred_check_branch
          %780 = sbr.rel (%p778) target = $region68
        $region67: #{stacked_rnn_forward.1} parent=39 // pred_region
          _
        $region68: #{stacked_rnn_forward.1} parent=39 // pred_fallthru
          _
        // Predicated region
        $region69: #{stacked_rnn_forward.1} parent=39 // pred_check
          %p781 = pneg %p218
        $region70: #{stacked_rnn_forward.1} parent=39 // pred_check_branch
          %783 = sbr.rel (%p781) target = $region72
        $region71: #{stacked_rnn_forward.1} parent=39 // pred_region
          %s785 = ssub.s32 128, 128
          %786 = vsyncadd %s774, %s785
          %s787 = sadd.s32 %s32, %s31
          %s788 = smul.addr %s787, 128
          %s789 = scalar_lea.hbm %s6, %s788
          %s791 = sshll.u32 %s777, 4
          %s792 = int_to_ptr.vmem [resolvable:$true] %s791
          %794 = dma.vmem_to_hbm [thread:$0]  %s792, 128, %s789, %s774
        $region72: #{stacked_rnn_forward.1} parent=39 // pred_fallthru
          _
      $region40: #{stacked_rnn_forward.1} parent=5 // pred_fallthru
        _
      %p795 = scmp.le.s32.totalorder 2, %s22
      // Predicated region
      $region73: #{stacked_rnn_forward.1} parent=5 // pred_check
        %p796 = pneg %p795
      $region74: #{stacked_rnn_forward.1} parent=5 // pred_check_branch
        %798 = sbr.rel (%p796) target = $region76
      $region75: #{stacked_rnn_forward.1} parent=5 // pred_region
        %s799 = ssub.s32 %s22, 2
        // Predicated region
        $region77: #{stacked_rnn_forward.1} parent=75 // pred_check
          %p800 = pneg %p196
        $region78: #{stacked_rnn_forward.1} parent=75 // pred_check_branch
          %802 = sbr.rel (%p800) target = $region80
        $region79: #{stacked_rnn_forward.1} parent=75 // pred_region
          %p803 = scmp.lt.s32.totalorder %s33, 2
          %s804 = scalar_select %p803, %s33, 2
          %p805 = scmp.lt.s32.totalorder %s34, 0
          %s806 = scalar_select %p805, %s34, 0
          %s807 = sadd.s32 %s806, %s804
          %s808 = smul.addr %s807, 8
          %s809 = scalar_lea.vmem %s5, %s808
        $region80: #{stacked_rnn_forward.1} parent=75 // pred_fallthru
          _
        // Predicated region
        $region81: #{stacked_rnn_forward.1} parent=75 // pred_check
          %p810 = pneg %p224
        $region82: #{stacked_rnn_forward.1} parent=75 // pred_check_branch
          %812 = sbr.rel (%p810) target = $region84
        $region83: #{stacked_rnn_forward.1} parent=75 // pred_region
          %s813 = sand.u32 %s209, 1
          %s814 = scalar_lea.sflag [#allocation6], %s813
          %s815 = sand.u32 %s209, 1
          %s816 = smul.addr %s815, 8
          %s817 = scalar_lea.vmem [#allocation9], %s816
          %818 = dma.done %s814, 128
        $region84: #{stacked_rnn_forward.1} parent=75 // pred_fallthru
          _
      $region76: #{stacked_rnn_forward.1} parent=5 // pred_fallthru
        _
    $region6: #{stacked_rnn_forward.1} parent=1 // loop_footer
      %s26 = sadd.s32 1, %s22
    $region7: #{stacked_rnn_forward.1} parent=1 // loop_footer_branch
      %21 = sbr.rel target = $region3
    $region8: #{stacked_rnn_forward.1} parent=1 // loop_exit
      _
    %819 = vsyncpa [#allocation5], 1
    %s820 = scalar_lea.sflag [#allocation5], 1
    %821 = vsyncpa %s820, 1
    %822 = vsyncpa [#allocation8], 1
    %s823 = scalar_lea.sflag [#allocation8], 1
    %824 = vsyncpa %s823, 1
    %825 = vsyncpa [#allocation6], 1
    %s826 = scalar_lea.sflag [#allocation6], 1
    %827 = vsyncpa %s826, 1

</llo_original>
